<compile_context>
chip_gen: v7x
topology: tpu7x:2x2x1
jax: 0.10.0
libtpu: 0.0.40
codegen_flags: <defaults>
</compile_context>

<pallas_src>
import jax
import jax.numpy as jnp
from jax.experimental import pallas as pl
from jax.experimental.pallas import tpu as pltpu  # noqa: F401  (used when batch-tiling, see TODOs)

EPS = 1e-5
LANE = 128


def _round_up(n, m):
    return ((n + m - 1) // m) * m


# -----------------------------------------------------------------------------
# Kernel
# -----------------------------------------------------------------------------
def _qnet_kernel(x_ref,
                 w1_ref, g1_ref, be1_ref,
                 w2_ref, g2_ref, be2_ref,
                 wq_ref, bq_ref,
                 out_ref):
    x = x_ref[...].astype(jnp.float32)

    def linear_bn_relu(h_in, w_ref, g_ref, be_ref):
        # Linear (bias cancelled exactly by train-mode BN mean subtraction).
        h = jnp.dot(h_in, w_ref[...], preferred_element_type=jnp.float32)
        # One-pass batch statistics (biased variance), clamped against cancellation.
        mu = jnp.mean(h, axis=0, keepdims=True)
        ex2 = jnp.mean(h * h, axis=0, keepdims=True)
        var = jnp.maximum(ex2 - mu * mu, 0.0)
        # Fold per-feature factors on the (1, N) row; full-tile work is 1 mul + 1 add.
        scale = g_ref[...] * jax.lax.rsqrt(var + EPS)
        shift = be_ref[...] - mu * scale
        return jnp.maximum(h * scale + shift, 0.0)

    h = linear_bn_relu(x, w1_ref, g1_ref, be1_ref)          # (B, H0)      lane-dense
    h = linear_bn_relu(h, w2_ref, g2_ref, be2_ref)          # (B, H1_pad)  lane-dense

    # Fused dueling head (value + advantage + combine pre-folded into wq/bq).
    # Single MXU matmul, lane-dense (B, 128) unmasked store.
    out_ref[...] = (jnp.dot(h, wq_ref[...], preferred_element_type=jnp.float32)
                    + bq_ref[...]).astype(out_ref.dtype)


def _full_spec(shape):
    # single-program grid: block == full array
    return pl.BlockSpec(shape, lambda: (0,) * len(shape))


# -----------------------------------------------------------------------------
# One-time parameter preparation (OFF the per-call path)
# -----------------------------------------------------------------------------
def prepare_kernel_params(params):
    """Fold the dueling head and zero-pad everything lane-dense, once."""
    w1, g1, be1 = params["w1"], params["g1"], params["be1"]
    w2, g2, be2 = params["w2"], params["g2"], params["be2"]
    wv, bv = params["wv"], params["bv"]
    wa, ba = params["wa"], params["ba"]

    h0, h1 = w2.shape
    action_size = wa.shape[1]

    # Fold value head + advantage head + dueling combine into one weight/bias:
    #   q[:, j] = h @ (wv + wa[:, j] - mean_k wa[:, k]) + (bv + ba[j] - mean_k ba[k])
    wq = wv + (wa - jnp.mean(wa, axis=1, keepdims=True))
    bq = bv + (ba - jnp.mean(ba, axis=1, keepdims=True))

    # Lane-dense zero padding: hidden-2 and head-out to multiples of 128.
    h1_pad = _round_up(h1, LANE)
    a_pad = _round_up(action_size, LANE)

    w2_p = jnp.zeros((h0, h1_pad), jnp.float32).at[:, :h1].set(w2)
    g2_p = jnp.zeros((1, h1_pad), jnp.float32).at[:, :h1].set(g2)     # pad = 0 -> lanes stay 0
    be2_p = jnp.zeros((1, h1_pad), jnp.float32).at[:, :h1].set(be2)   # pad = 0 -> lanes stay 0
    wq_p = jnp.zeros((h1_pad, a_pad), jnp.float32).at[:h1, :action_size].set(wq)
    bq_p = jnp.zeros((1, a_pad), jnp.float32).at[:, :action_size].set(bq)

    return dict(w1=w1.astype(jnp.float32), g1=g1, be1=be1,
                w2=w2_p, g2=g2_p, be2=be2_p,
                wq=wq_p, bq=bq_p)


# -----------------------------------------------------------------------------
# Forward
# -----------------------------------------------------------------------------
def qnetwork_forward_padded(state, kp):
    """state: (B, state_size) f32.  kp: prepare_kernel_params(...) output.
    Returns the lane-dense (B, 128) Q slab; lanes >= action_size are exactly 0."""
    B, s = state.shape
    h0 = kp["w1"].shape[1]
    h1_pad = kp["w2"].shape[1]
    a_pad = kp["wq"].shape[1]

    args = (state,
            kp["w1"], kp["g1"], kp["be1"],
            kp["w2"], kp["g2"], kp["be2"],
            kp["wq"], kp["bq"])

    flops = 2 * B * (s * h0 + h0 * h1_pad + h1_pad * a_pad)
    bytes_accessed = sum(int(a.size) * 4 for a in args) + B * a_pad * 4

    return pl.pallas_call(
        _qnet_kernel,
        out_shape=jax.ShapeDtypeStruct((B, a_pad), jnp.float32),
        in_specs=[_full_spec(a.shape) for a in args],
        out_specs=_full_spec((B, a_pad)),
        cost_estimate=pl.CostEstimate(flops=flops, transcendentals=0,
                                      bytes_accessed=bytes_accessed),
    )(*args)


def qnetwork_forward(state, kp, action_size):
    """Convenience wrapper returning exactly (B, action_size).  Prefer consuming
    the padded slab from qnetwork_forward_padded directly on the hot path."""
    return qnetwork_forward_padded(state, kp)[:, :action_size]


# -----------------------------------------------------------------------------
# Init + pure-JAX reference (original, unfolded module semantics)
# -----------------------------------------------------------------------------
def init_qnetwork_params(key, state_size, action_size, hidden_layers=(128, 64)):
    """Deterministic init mirroring PyTorch Linear default (U[-1/sqrt(fan_in), +])."""
    h0, h1 = hidden_layers

    def linear(key, fan_in, fan_out):
        kw, kb = jax.random.split(key)
        bound = 1.0 / jnp.sqrt(fan_in)
        w = jax.random.uniform(kw, (fan_in, fan_out), jnp.float32, -bound, bound)  # (in, out)
        b = jax.random.uniform(kb, (1, fan_out), jnp.float32, -bound, bound)
        return w, b

    k1, k2, kv, ka = jax.random.split(key, 4)
    w1, b1 = linear(k1, state_size, h0)
    w2, b2 = linear(k2, h0, h1)
    wv, bv = linear(kv, h1, 1)
    wa, ba = linear(ka, h1, action_size)

    return dict(
        # b1/b2 kept for module fidelity but never sent to the kernel:
        # train-mode BN cancels them exactly.
        w1=w1, b1=b1, g1=jnp.ones((1, h0), jnp.float32), be1=jnp.zeros((1, h0), jnp.float32),
        w2=w2, b2=b2, g2=jnp.ones((1, h1), jnp.float32), be2=jnp.zeros((1, h1), jnp.float32),
        wv=wv, bv=bv, wa=wa, ba=ba,
    )


def _reference_forward(state, p):
    def bn(x, g, b):
        mu = jnp.mean(x, axis=0, keepdims=True)
        var = jnp.mean((x - mu) ** 2, axis=0, keepdims=True)
        return (x - mu) / jnp.sqrt(var + EPS) * g + b

    h = jnp.maximum(bn(state @ p["w1"] + p["b1"], p["g1"], p["be1"]), 0.0)
    h = jnp.maximum(bn(h @ p["w2"] + p["b2"], p["g2"], p["be2"]), 0.0)
    v = h @ p["wv"] + p["bv"]
    a = h @ p["wa"] + p["ba"]
    return v + (a - jnp.mean(a, axis=1, keepdims=True))


if __name__ == "__main__":
    key = jax.random.PRNGKey(0)
    kp_key, kx_key = jax.random.split(key)

    batch = 8
    state_size = 16
    action_size = 4
    hidden_layers = (128, 64)

    params = init_qnetwork_params(kp_key, state_size, action_size, hidden_layers)
    state = jax.random.normal(kx_key, (batch, state_size), jnp.float32)

    # One-time prep (fold + pad), kept off the per-call inference path.
    kparams = jax.tree_util.tree_map(jax.block_until_ready, prepare_kernel_params(params))

    fwd = jax.jit(qnetwork_forward_padded)
    q_pad = jax.block_until_ready(fwd(state, kparams))

    # Correctness check only: slice the padded slab back to action_size.
    q_vals = q_pad[:, :action_size]
    ref = _reference_forward(state, params)

    assert q_pad.shape == (batch, LANE)
    assert q_vals.shape == (batch, action_size)
    assert jnp.allclose(q_pad[:, action_size:], 0.0), "padded lanes must be exactly zero"
    assert jnp.allclose(q_vals, ref, atol=1e-4, rtol=1e-4), \
        f"max abs err {jnp.max(jnp.abs(q_vals - ref))}"

    print("KERNEL_OK")
</pallas_src>

<mosaic_0001>
module attributes {stable_mosaic.version = 11 : i64} {
  func.func @_qnet_kernel(%arg0: memref<8x16xf32, #tpu.memory_space<vmem>>, %arg1: memref<16x128xf32, #tpu.memory_space<vmem>>, %arg2: memref<1x128xf32, #tpu.memory_space<vmem>>, %arg3: memref<1x128xf32, #tpu.memory_space<vmem>>, %arg4: memref<128x128xf32, #tpu.memory_space<vmem>>, %arg5: memref<1x128xf32, #tpu.memory_space<vmem>>, %arg6: memref<1x128xf32, #tpu.memory_space<vmem>>, %arg7: memref<128x128xf32, #tpu.memory_space<vmem>>, %arg8: memref<1x128xf32, #tpu.memory_space<vmem>>, %arg9: memref<8x128xf32, #tpu.memory_space<vmem>>) attributes {dimension_semantics = [], scalar_prefetch = 0 : i64, scratch_operands = 0 : i64, tpu.core_type = #tpu.core_type<tc>} {
    %c0 = arith.constant 0 : index
    %c0_0 = arith.constant 0 : index
    %0 = vector.load %arg0[%c0, %c0_0] : memref<8x16xf32, #tpu.memory_space<vmem>>, vector<8x16xf32>
    %c0_1 = arith.constant 0 : index
    %c0_2 = arith.constant 0 : index
    %1 = vector.load %arg1[%c0_1, %c0_2] : memref<16x128xf32, #tpu.memory_space<vmem>>, vector<16x128xf32>
    %cst = arith.constant dense<0.000000e+00> : vector<8x128xf32>
    %2 = tpu.matmul %0, %1, %cst {dimension_numbers = #tpu.dot_dimension_numbers<[1], [0], [0], [1], [0, 0, 1, 1], [], []>} : vector<8x16xf32>, vector<16x128xf32>, vector<8x128xf32> -> vector<8x128xf32>
    %cst_3 = arith.constant dense<0.000000e+00> : vector<128xf32>
    %3 = vector.multi_reduction <add>, %2, %cst_3 [0] : vector<8x128xf32> to vector<128xf32>
    %4 = vector.shape_cast %3 : vector<128xf32> to vector<1x128xf32>
    %cst_4 = arith.constant 8.000000e+00 : f32
    %5 = vector.broadcast %cst_4 : f32 to vector<1x128xf32>
    %6 = arith.divf %4, %5 : vector<1x128xf32>
    %7 = arith.mulf %2, %2 : vector<8x128xf32>
    %cst_5 = arith.constant dense<0.000000e+00> : vector<128xf32>
    %8 = vector.multi_reduction <add>, %7, %cst_5 [0] : vector<8x128xf32> to vector<128xf32>
    %9 = vector.shape_cast %8 : vector<128xf32> to vector<1x128xf32>
    %cst_6 = arith.constant 8.000000e+00 : f32
    %10 = vector.broadcast %cst_6 : f32 to vector<1x128xf32>
    %11 = arith.divf %9, %10 : vector<1x128xf32>
    %12 = arith.mulf %6, %6 : vector<1x128xf32>
    %13 = arith.subf %11, %12 : vector<1x128xf32>
    %cst_7 = arith.constant 0.000000e+00 : f32
    %14 = vector.broadcast %cst_7 : f32 to vector<1x128xf32>
    %15 = arith.maximumf %13, %14 : vector<1x128xf32>
    %c0_8 = arith.constant 0 : index
    %c0_9 = arith.constant 0 : index
    %16 = vector.load %arg2[%c0_8, %c0_9] : memref<1x128xf32, #tpu.memory_space<vmem>>, vector<1x128xf32>
    %cst_10 = arith.constant 9.99999974E-6 : f32
    %17 = vector.broadcast %cst_10 : f32 to vector<1x128xf32>
    %18 = arith.addf %15, %17 : vector<1x128xf32>
    %19 = math.rsqrt %18 : vector<1x128xf32>
    %20 = arith.mulf %16, %19 : vector<1x128xf32>
    %c0_11 = arith.constant 0 : index
    %c0_12 = arith.constant 0 : index
    %21 = vector.load %arg3[%c0_11, %c0_12] : memref<1x128xf32, #tpu.memory_space<vmem>>, vector<1x128xf32>
    %22 = arith.mulf %6, %20 : vector<1x128xf32>
    %23 = arith.subf %21, %22 : vector<1x128xf32>
    %24 = vector.broadcast %20 : vector<1x128xf32> to vector<8x128xf32>
    %25 = arith.mulf %2, %24 : vector<8x128xf32>
    %26 = vector.broadcast %23 : vector<1x128xf32> to vector<8x128xf32>
    %27 = arith.addf %25, %26 : vector<8x128xf32>
    %cst_13 = arith.constant 0.000000e+00 : f32
    %28 = vector.broadcast %cst_13 : f32 to vector<8x128xf32>
    %29 = arith.maximumf %27, %28 : vector<8x128xf32>
    %c0_14 = arith.constant 0 : index
    %c0_15 = arith.constant 0 : index
    %30 = vector.load %arg4[%c0_14, %c0_15] : memref<128x128xf32, #tpu.memory_space<vmem>>, vector<128x128xf32>
    %cst_16 = arith.constant dense<0.000000e+00> : vector<8x128xf32>
    %31 = tpu.matmul %29, %30, %cst_16 {dimension_numbers = #tpu.dot_dimension_numbers<[1], [0], [0], [1], [0, 0, 1, 1], [], []>} : vector<8x128xf32>, vector<128x128xf32>, vector<8x128xf32> -> vector<8x128xf32>
    %cst_17 = arith.constant dense<0.000000e+00> : vector<128xf32>
    %32 = vector.multi_reduction <add>, %31, %cst_17 [0] : vector<8x128xf32> to vector<128xf32>
    %33 = vector.shape_cast %32 : vector<128xf32> to vector<1x128xf32>
    %cst_18 = arith.constant 8.000000e+00 : f32
    %34 = vector.broadcast %cst_18 : f32 to vector<1x128xf32>
    %35 = arith.divf %33, %34 : vector<1x128xf32>
    %36 = arith.mulf %31, %31 : vector<8x128xf32>
    %cst_19 = arith.constant dense<0.000000e+00> : vector<128xf32>
    %37 = vector.multi_reduction <add>, %36, %cst_19 [0] : vector<8x128xf32> to vector<128xf32>
    %38 = vector.shape_cast %37 : vector<128xf32> to vector<1x128xf32>
    %cst_20 = arith.constant 8.000000e+00 : f32
    %39 = vector.broadcast %cst_20 : f32 to vector<1x128xf32>
    %40 = arith.divf %38, %39 : vector<1x128xf32>
    %41 = arith.mulf %35, %35 : vector<1x128xf32>
    %42 = arith.subf %40, %41 : vector<1x128xf32>
    %cst_21 = arith.constant 0.000000e+00 : f32
    %43 = vector.broadcast %cst_21 : f32 to vector<1x128xf32>
    %44 = arith.maximumf %42, %43 : vector<1x128xf32>
    %c0_22 = arith.constant 0 : index
    %c0_23 = arith.constant 0 : index
    %45 = vector.load %arg5[%c0_22, %c0_23] : memref<1x128xf32, #tpu.memory_space<vmem>>, vector<1x128xf32>
    %cst_24 = arith.constant 9.99999974E-6 : f32
    %46 = vector.broadcast %cst_24 : f32 to vector<1x128xf32>
    %47 = arith.addf %44, %46 : vector<1x128xf32>
    %48 = math.rsqrt %47 : vector<1x128xf32>
    %49 = arith.mulf %45, %48 : vector<1x128xf32>
    %c0_25 = arith.constant 0 : index
    %c0_26 = arith.constant 0 : index
    %50 = vector.load %arg6[%c0_25, %c0_26] : memref<1x128xf32, #tpu.memory_space<vmem>>, vector<1x128xf32>
    %51 = arith.mulf %35, %49 : vector<1x128xf32>
    %52 = arith.subf %50, %51 : vector<1x128xf32>
    %53 = vector.broadcast %49 : vector<1x128xf32> to vector<8x128xf32>
    %54 = arith.mulf %31, %53 : vector<8x128xf32>
    %55 = vector.broadcast %52 : vector<1x128xf32> to vector<8x128xf32>
    %56 = arith.addf %54, %55 : vector<8x128xf32>
    %cst_27 = arith.constant 0.000000e+00 : f32
    %57 = vector.broadcast %cst_27 : f32 to vector<8x128xf32>
    %58 = arith.maximumf %56, %57 : vector<8x128xf32>
    %c0_28 = arith.constant 0 : index
    %c0_29 = arith.constant 0 : index
    %59 = vector.load %arg7[%c0_28, %c0_29] : memref<128x128xf32, #tpu.memory_space<vmem>>, vector<128x128xf32>
    %cst_30 = arith.constant dense<0.000000e+00> : vector<8x128xf32>
    %60 = tpu.matmul %58, %59, %cst_30 {dimension_numbers = #tpu.dot_dimension_numbers<[1], [0], [0], [1], [0, 0, 1, 1], [], []>} : vector<8x128xf32>, vector<128x128xf32>, vector<8x128xf32> -> vector<8x128xf32>
    %c0_31 = arith.constant 0 : index
    %c0_32 = arith.constant 0 : index
    %61 = vector.load %arg8[%c0_31, %c0_32] : memref<1x128xf32, #tpu.memory_space<vmem>>, vector<1x128xf32>
    %62 = vector.broadcast %61 : vector<1x128xf32> to vector<8x128xf32>
    %63 = arith.addf %60, %62 : vector<8x128xf32>
    %c0_33 = arith.constant 0 : index
    %c0_34 = arith.constant 0 : index
    %64 = vector.load %arg9[%c0_33, %c0_34] : memref<8x128xf32, #tpu.memory_space<vmem>>, vector<8x128xf32>
    tpu.vector_store %arg9[%c0_33, %c0_34], %63 {strides = array<i32>} : memref<8x128xf32, #tpu.memory_space<vmem>>, vector<8x128xf32>,
    return
  }
}

</mosaic_0001>

<llo_original>
// kernel: qnetwork_forward_padded.1
$region0: #{qnetwork_forward_padded.1}
  #allocation0 [shape = 'u32[]', space=smem, size = 0x4, offset = 0x4, fixed_abs, tag = 'smem constant byte address 0x4 - core index']
  #allocation1 [shape = 'u32[144,128]{1,0:T(1,128)}', space=vmem, size = 0x12000, scoped, tag = 'internal scratch']
  %s0 = inlined_call_operand.hbm [shape: f32[8,16], index: 0, kind: input, shape index: {}]
  %s1 = inlined_call_operand.vmem [shape: f32[16,128], index: 1, kind: input, shape index: {}]
  %s2 = inlined_call_operand.vmem [shape: f32[1,128], index: 2, kind: input, shape index: {}]
  %s3 = inlined_call_operand.vmem [shape: f32[1,128], index: 3, kind: input, shape index: {}]
  %s4 = inlined_call_operand.hbm [shape: f32[128,128], index: 4, kind: input, shape index: {}]
  %s5 = inlined_call_operand.vmem [shape: f32[1,128], index: 5, kind: input, shape index: {}]
  %s6 = inlined_call_operand.vmem [shape: f32[1,128], index: 6, kind: input, shape index: {}]
  %s7 = inlined_call_operand.hbm [shape: f32[128,128], index: 7, kind: input, shape index: {}]
  %s8 = inlined_call_operand.vmem [shape: f32[1,128], index: 8, kind: input, shape index: {}]
  %s9 = inlined_call_operand.hbm [shape: f32[8,128], index: 9, kind: output, shape index: {}]
  %s10 = sld [smem:[#allocation0]]
  $region58: #{qnetwork_forward_padded.1} parent=0
    _
  %s12 = ssub.s32 1, %s10
  %s13 = scalar_select 0, %s12, %s10
  $region1: #{qnetwork_forward_padded.1} parent=0
    #allocation2 [shape = 'u8[4096]{0}', space=vmem, size = 0x1000, scoped, tag = 'input window, operand 0, single buffered']
    #allocation3 [shape = 's32[1]{0}', space=sflag, size = 0x4, scoped, tag = 'scoped memory for qnetwork_forward_padded.1']
    #allocation4 [shape = 's32[1]{0}', space=sflag, size = 0x4, scoped, tag = 'scoped memory for qnetwork_forward_padded.1']
    #allocation5 [shape = 'u8[65536]{0}', space=vmem, size = 0x10000, scoped, tag = 'input window, operand 4, single buffered']
    #allocation6 [shape = 's32[1]{0}', space=sflag, size = 0x4, scoped, tag = 'scoped memory for qnetwork_forward_padded.1']
    #allocation7 [shape = 'u8[65536]{0}', space=vmem, size = 0x10000, scoped, tag = 'input window, operand 7, single buffered']
    #allocation8 [shape = 'u8[4096]{0}', space=vmem, size = 0x1000, scoped, tag = 'output window, operand 0, single buffered']
    %14 = vsyncpa [#allocation3], 0
    %15 = vsyncpa [#allocation6], 0
    %16 = vsyncpa [#allocation4], 0
    // Predicated region
    $region2: #{qnetwork_forward_padded.1} parent=1 // pred_check
      _
    $region3: #{qnetwork_forward_padded.1} parent=1 // pred_check_branch
      %18 = sbr.rel (0) target = $region5
    $region4: #{qnetwork_forward_padded.1} parent=1 // pred_region
      %s20 = ssub.s32 128, 128
      %21 = vsyncadd [#allocation3], %s20
      %s23 = sshll.u32 [#allocation2], 4
      %s24 = int_to_ptr.vmem [resolvable:$true] %s23
      %26 = dma.hbm_to_vmem [thread:$0]  %s0, 128, %s24, [#allocation3]
    $region5: #{qnetwork_forward_padded.1} parent=1 // pred_fallthru
      _
    // Predicated region
    $region6: #{qnetwork_forward_padded.1} parent=1 // pred_check
      _
    $region7: #{qnetwork_forward_padded.1} parent=1 // pred_check_branch
      %28 = sbr.rel (0) target = $region9
    $region8: #{qnetwork_forward_padded.1} parent=1 // pred_region
      _
    $region9: #{qnetwork_forward_padded.1} parent=1 // pred_fallthru
      _
    // Predicated region
    $region10: #{qnetwork_forward_padded.1} parent=1 // pred_check
      _
    $region11: #{qnetwork_forward_padded.1} parent=1 // pred_check_branch
      %30 = sbr.rel (0) target = $region13
    $region12: #{qnetwork_forward_padded.1} parent=1 // pred_region
      _
    $region13: #{qnetwork_forward_padded.1} parent=1 // pred_fallthru
      _
    // Predicated region
    $region14: #{qnetwork_forward_padded.1} parent=1 // pred_check
      _
    $region15: #{qnetwork_forward_padded.1} parent=1 // pred_check_branch
      %32 = sbr.rel (0) target = $region17
    $region16: #{qnetwork_forward_padded.1} parent=1 // pred_region
      _
    $region17: #{qnetwork_forward_padded.1} parent=1 // pred_fallthru
      _
    // Predicated region
    $region18: #{qnetwork_forward_padded.1} parent=1 // pred_check
      _
    $region19: #{qnetwork_forward_padded.1} parent=1 // pred_check_branch
      %34 = sbr.rel (0) target = $region21
    $region20: #{qnetwork_forward_padded.1} parent=1 // pred_region
      %s36 = ssub.s32 2048, 2048
      %37 = vsyncadd [#allocation6], %s36
      %s38 = sshll.u32 [#allocation5], 4
      %s39 = int_to_ptr.vmem [resolvable:$true] %s38
      %44 = dma.hbm_to_vmem [thread:$0]  %s4, 2048, %s39, [#allocation6], 128, 128, 8
    $region21: #{qnetwork_forward_padded.1} parent=1 // pred_fallthru
      _
    // Predicated region
    $region22: #{qnetwork_forward_padded.1} parent=1 // pred_check
      _
    $region23: #{qnetwork_forward_padded.1} parent=1 // pred_check_branch
      %46 = sbr.rel (0) target = $region25
    $region24: #{qnetwork_forward_padded.1} parent=1 // pred_region
      _
    $region25: #{qnetwork_forward_padded.1} parent=1 // pred_fallthru
      _
    // Predicated region
    $region26: #{qnetwork_forward_padded.1} parent=1 // pred_check
      _
    $region27: #{qnetwork_forward_padded.1} parent=1 // pred_check_branch
      %48 = sbr.rel (0) target = $region29
    $region28: #{qnetwork_forward_padded.1} parent=1 // pred_region
      _
    $region29: #{qnetwork_forward_padded.1} parent=1 // pred_fallthru
      _
    // Predicated region
    $region30: #{qnetwork_forward_padded.1} parent=1 // pred_check
      _
    $region31: #{qnetwork_forward_padded.1} parent=1 // pred_check_branch
      %50 = sbr.rel (0) target = $region33
    $region32: #{qnetwork_forward_padded.1} parent=1 // pred_region
      %s52 = ssub.s32 2048, 2048
      %53 = vsyncadd [#allocation6], %s52
      %s54 = sshll.u32 [#allocation7], 4
      %s55 = int_to_ptr.vmem [resolvable:$true] %s54
      %60 = dma.hbm_to_vmem [thread:$0]  %s7, 2048, %s55, [#allocation6], 128, 128, 8
    $region33: #{qnetwork_forward_padded.1} parent=1 // pred_fallthru
      _
    // Predicated region
    $region34: #{qnetwork_forward_padded.1} parent=1 // pred_check
      _
    $region35: #{qnetwork_forward_padded.1} parent=1 // pred_check_branch
      %62 = sbr.rel (0) target = $region37
    $region36: #{qnetwork_forward_padded.1} parent=1 // pred_region
      _
    $region37: #{qnetwork_forward_padded.1} parent=1 // pred_fallthru
      _
    // Predicated region
    $region38: #{qnetwork_forward_padded.1} parent=1 // pred_check
      _
    $region39: #{qnetwork_forward_padded.1} parent=1 // pred_check_branch
      %64 = sbr.rel (0) target = $region41
    $region40: #{qnetwork_forward_padded.1} parent=1 // pred_region
      %65 = dma.done [#allocation3], 128
    $region41: #{qnetwork_forward_padded.1} parent=1 // pred_fallthru
      _
    // Predicated region
    $region42: #{qnetwork_forward_padded.1} parent=1 // pred_check
      _
    $region43: #{qnetwork_forward_padded.1} parent=1 // pred_check_branch
      %67 = sbr.rel (0) target = $region45
    $region44: #{qnetwork_forward_padded.1} parent=1 // pred_region
      %68 = dma.done [#allocation6], 2048
    $region45: #{qnetwork_forward_padded.1} parent=1 // pred_fallthru
      _
    // Predicated region
    $region46: #{qnetwork_forward_padded.1} parent=1 // pred_check
      _
    $region47: #{qnetwork_forward_padded.1} parent=1 // pred_check_branch
      %70 = sbr.rel (0) target = $region49
    $region48: #{qnetwork_forward_padded.1} parent=1 // pred_region
      %71 = dma.done [#allocation6], 2048
    $region49: #{qnetwork_forward_padded.1} parent=1 // pred_fallthru
      _
    %v72 = vld [vmem:[#allocation2] sm:$0xff]
    %v73 = vld [vmem:[%s1] sm:$0xff]
    %v74 = vld [vmem:[%s1 + $0x8] sm:$0xff]
    %vm75 = vcmask 130048
    %v77 = vsel %vm75, %v72, 0
    %79 = vmatprep.subr.mxu0 0.0
    %80 = vmatpush1.msra.mxu0 %v73
    %81 = vmatprep.subr.mxu0 0.0
    %82 = vmatpush1.msra.mxu0 %v74
    %83 = vmatprep.subr.mxu0 0.0
    %84 = vmatpush1.msra.mxu0 0.0
    %85 = vmatprep.subr.mxu0 0.0
    %86 = vmatpush1.msra.mxu0 0.0
    %87 = vmatprep.subr.mxu0 0.0
    %88 = vmatpush1.msra.mxu0 0.0
    %89 = vmatprep.subr.mxu0 0.0
    %90 = vmatpush1.msra.mxu0 0.0
    %91 = vmatprep.subr.mxu0 0.0
    %92 = vmatpush1.msra.mxu0 0.0
    %93 = vmatprep.subr.mxu0 0.0
    %94 = vmatpush1.msra.mxu0 0.0
    %95 = vmatprep.subr.mxu0 0.0
    %96 = vmatpush1.msra.mxu0 0.0
    %97 = vmatprep.subr.mxu0 0.0
    %98 = vmatpush1.msra.mxu0 0.0
    %99 = vmatprep.subr.mxu0 0.0
    %100 = vmatpush1.msra.mxu0 0.0
    %101 = vmatprep.subr.mxu0 0.0
    %102 = vmatpush1.msra.mxu0 0.0
    %103 = vmatprep.subr.mxu0 0.0
    %104 = vmatpush1.msra.mxu0 0.0
    %105 = vmatprep.subr.mxu0 0.0
    %106 = vmatpush1.msra.mxu0 0.0
    %107 = vmatprep.subr.mxu0 0.0
    %108 = vmatpush1.msra.mxu0 0.0
    %109 = vmatprep.subr.mxu0 0.0
    %110 = vmatpush1.msra.mxu0 0.0
    %111 = vmatprep.subr.mxu0 0.0
    %112 = vmatpush1.msra.mxu0 0.0
    %113 = vmatprep.subr.mxu0 0.0
    %114 = vmatpush1.msra.mxu0 0.0
    %115 = vmatprep.subr.mxu0 0.0
    %116 = vmatpush1.msra.mxu0 0.0
    %117 = vmatprep.subr.mxu0 0.0
    %118 = vmatpush1.msra.mxu0 0.0
    %119 = vmatprep.subr.mxu0 0.0
    %120 = vmatpush1.msra.mxu0 0.0
    %121 = vmatprep.subr.mxu0 0.0
    %122 = vmatpush1.msra.mxu0 0.0
    %123 = vmatprep.subr.mxu0 0.0
    %124 = vmatpush1.msra.mxu0 0.0
    %125 = vmatprep.subr.mxu0 0.0
    %126 = vmatpush1.msra.mxu0 0.0
    %127 = vmatprep.subr.mxu0 0.0
    %128 = vmatpush1.msra.mxu0 0.0
    %129 = vmatprep.subr.mxu0 0.0
    %130 = vmatpush1.msra.mxu0 0.0
    %131 = vmatprep.subr.mxu0 0.0
    %132 = vmatpush1.msra.mxu0 0.0
    %133 = vmatprep.subr.mxu0 0.0
    %134 = vmatpush1.msra.mxu0 0.0
    %135 = vmatprep.subr.mxu0 0.0
    %136 = vmatpush1.msra.mxu0 0.0
    %137 = vmatprep.subr.mxu0 0.0
    %138 = vmatpush1.msra.mxu0 0.0
    %139 = vmatprep.subr.mxu0 0.0
    %140 = vmatpush1.msra.mxu0 0.0
    %141 = vmatprep.subr.mxu0 0.0
    %142 = vmatpush1.msra.mxu0 0.0
    %143 = vmatprep.mubr.f32.mxu0 0.0
    %144 = vmatmul.mubr.f32.gmra.mrb[0].mxu0 %v77
    %v145 = vpop.f32.mrb[0].mxu0
    %v146 = vadd.f32 0.0, %v145
    %v147 = vpop.f32.mrb[0].mxu0
    %148 = vdwg.mxu0
    %v149 = vrot.slane %v146, 4
    %v150 = vadd.f32 %v146, %v149
    %v151 = vrot.slane %v150, 2
    %v152 = vadd.f32 %v150, %v151
    %v153 = vrot.slane %v152, 1
    %v154 = vadd.f32 %v152, %v153
    %v155 = vrcp.pop 8.0
    %v156 = vmul.f32 %v154, %v155
    %v157 = vmul.f32 %v146, %v146
    %v158 = vrot.slane %v157, 4
    %v159 = vadd.f32 %v157, %v158
    %v160 = vrot.slane %v159, 2
    %v161 = vadd.f32 %v159, %v160
    %v162 = vrot.slane %v161, 1
    %v163 = vadd.f32 %v161, %v162
    %v164 = vmul.f32 %v163, %v155
    %v165 = vmul.f32 %v156, %v156
    %v166 = vsub.f32 %v164, %v165
    %v167 = vmax.f32 %v166, 0.0
    %v168 = vld [vmem:[%s2] sm:$0x1]
    %v169 = vadd.f32 %v167, 1e-05
    %v170 = vrsqrt.pop %v169
    %v171 = vmul.f32 %v168, %v170
    %v172 = vld [vmem:[%s3] sm:$0x1]
    %v173 = vmul.f32 %v156, %v171
    %v174 = vsub.f32 %v172, %v173
    %v176 = vlaneseq
    %v177 = vshrl.u32 %v176, 7
    %v178 = vsub.s32 0, %v177
    %v179 = vrot.slane %v171, %v178
    %v181 = vmul.f32 %v146, %v179
    %v183 = vlaneseq
    %v184 = vshrl.u32 %v183, 7
    %v185 = vsub.s32 0, %v184
    %v186 = vrot.slane %v174, %v185
    %v188 = vadd.f32 %v181, %v186
    %v189 = vmax.f32 %v188, 0.0
    %v190 = vld [vmem:[#allocation5] sm:$0xff]
    %v191 = vld [vmem:[#allocation5 + $0x8] sm:$0xff]
    %v192 = vld [vmem:[#allocation5 + $0x10] sm:$0xff]
    %v193 = vld [vmem:[#allocation5 + $0x18] sm:$0xff]
    %v194 = vld [vmem:[#allocation5 + $0x20] sm:$0xff]
    %v195 = vld [vmem:[#allocation5 + $0x28] sm:$0xff]
    %v196 = vld [vmem:[#allocation5 + $0x30] sm:$0xff]
    %v197 = vld [vmem:[#allocation5 + $0x38] sm:$0xff]
    %v198 = vld [vmem:[#allocation5 + $0x40] sm:$0xff]
    %v199 = vld [vmem:[#allocation5 + $0x48] sm:$0xff]
    %v200 = vld [vmem:[#allocation5 + $0x50] sm:$0xff]
    %v201 = vld [vmem:[#allocation5 + $0x58] sm:$0xff]
    %v202 = vld [vmem:[#allocation5 + $0x60] sm:$0xff]
    %v203 = vld [vmem:[#allocation5 + $0x68] sm:$0xff]
    %v204 = vld [vmem:[#allocation5 + $0x70] sm:$0xff]
    %v205 = vld [vmem:[#allocation5 + $0x78] sm:$0xff]
    %206 = vmatprep.subr.mxu0 0.0
    %207 = vmatpush1.msra.mxu0 %v190
    %208 = vmatprep.subr.mxu0 0.0
    %209 = vmatpush1.msra.mxu0 %v191
    %210 = vmatprep.subr.mxu0 0.0
    %211 = vmatpush1.msra.mxu0 %v192
    %212 = vmatprep.subr.mxu0 0.0
    %213 = vmatpush1.msra.mxu0 %v193
    %214 = vmatprep.subr.mxu0 0.0
    %215 = vmatpush1.msra.mxu0 %v194
    %216 = vmatprep.subr.mxu0 0.0
    %217 = vmatpush1.msra.mxu0 %v195
    %218 = vmatprep.subr.mxu0 0.0
    %219 = vmatpush1.msra.mxu0 %v196
    %220 = vmatprep.subr.mxu0 0.0
    %221 = vmatpush1.msra.mxu0 %v197
    %222 = vmatprep.subr.mxu0 0.0
    %223 = vmatpush1.msra.mxu0 %v198
    %224 = vmatprep.subr.mxu0 0.0
    %225 = vmatpush1.msra.mxu0 %v199
    %226 = vmatprep.subr.mxu0 0.0
    %227 = vmatpush1.msra.mxu0 %v200
    %228 = vmatprep.subr.mxu0 0.0
    %229 = vmatpush1.msra.mxu0 %v201
    %230 = vmatprep.subr.mxu0 0.0
    %231 = vmatpush1.msra.mxu0 %v202
    %232 = vmatprep.subr.mxu0 0.0
    %233 = vmatpush1.msra.mxu0 %v203
    %234 = vmatprep.subr.mxu0 0.0
    %235 = vmatpush1.msra.mxu0 %v204
    %236 = vmatprep.subr.mxu0 0.0
    %237 = vmatpush1.msra.mxu0 %v205
    %238 = vmatprep.subr.mxu0 0.0
    %239 = vmatpush1.msra.mxu0 0.0
    %240 = vmatprep.subr.mxu0 0.0
    %241 = vmatpush1.msra.mxu0 0.0
    %242 = vmatprep.subr.mxu0 0.0
    %243 = vmatpush1.msra.mxu0 0.0
    %244 = vmatprep.subr.mxu0 0.0
    %245 = vmatpush1.msra.mxu0 0.0
    %246 = vmatprep.subr.mxu0 0.0
    %247 = vmatpush1.msra.mxu0 0.0
    %248 = vmatprep.subr.mxu0 0.0
    %249 = vmatpush1.msra.mxu0 0.0
    %250 = vmatprep.subr.mxu0 0.0
    %251 = vmatpush1.msra.mxu0 0.0
    %252 = vmatprep.subr.mxu0 0.0
    %253 = vmatpush1.msra.mxu0 0.0
    %254 = vmatprep.subr.mxu0 0.0
    %255 = vmatpush1.msra.mxu0 0.0
    %256 = vmatprep.subr.mxu0 0.0
    %257 = vmatpush1.msra.mxu0 0.0
    %258 = vmatprep.subr.mxu0 0.0
    %259 = vmatpush1.msra.mxu0 0.0
    %260 = vmatprep.subr.mxu0 0.0
    %261 = vmatpush1.msra.mxu0 0.0
    %262 = vmatprep.subr.mxu0 0.0
    %263 = vmatpush1.msra.mxu0 0.0
    %264 = vmatprep.subr.mxu0 0.0
    %265 = vmatpush1.msra.mxu0 0.0
    %266 = vmatprep.subr.mxu0 0.0
    %267 = vmatpush1.msra.mxu0 0.0
    %268 = vmatprep.subr.mxu0 0.0
    %269 = vmatpush1.msra.mxu0 0.0
    %270 = vmatprep.mubr.f32.mxu0 0.0
    %271 = vmatmul.mubr.f32.gmra.mrb[0].mxu0 %v189
    %v272 = vpop.f32.mrb[0].mxu0
    %v273 = vadd.f32 0.0, %v272
    %v274 = vpop.f32.mrb[0].mxu0
    %275 = vdwg.mxu0
    %v276 = vrot.slane %v273, 4
    %v277 = vadd.f32 %v273, %v276
    %v278 = vrot.slane %v277, 2
    %v279 = vadd.f32 %v277, %v278
    %v280 = vrot.slane %v279, 1
    %v281 = vadd.f32 %v279, %v280
    %v282 = vmul.f32 %v281, %v155
    %v283 = vmul.f32 %v273, %v273
    %v284 = vrot.slane %v283, 4
    %v285 = vadd.f32 %v283, %v284
    %v286 = vrot.slane %v285, 2
    %v287 = vadd.f32 %v285, %v286
    %v288 = vrot.slane %v287, 1
    %v289 = vadd.f32 %v287, %v288
    %v290 = vmul.f32 %v289, %v155
    %v291 = vmul.f32 %v282, %v282
    %v292 = vsub.f32 %v290, %v291
    %v293 = vmax.f32 %v292, 0.0
    %v294 = vld [vmem:[%s5] sm:$0x1]
    %v295 = vadd.f32 %v293, 1e-05
    %v296 = vrsqrt.pop %v295
    %v297 = vmul.f32 %v294, %v296
    %v298 = vld [vmem:[%s6] sm:$0x1]
    %v299 = vmul.f32 %v282, %v297
    %v300 = vsub.f32 %v298, %v299
    %v302 = vlaneseq
    %v303 = vshrl.u32 %v302, 7
    %v304 = vsub.s32 0, %v303
    %v305 = vrot.slane %v297, %v304
    %v307 = vmul.f32 %v273, %v305
    %v309 = vlaneseq
    %v310 = vshrl.u32 %v309, 7
    %v311 = vsub.s32 0, %v310
    %v312 = vrot.slane %v300, %v311
    %v314 = vadd.f32 %v307, %v312
    %v315 = vmax.f32 %v314, 0.0
    %v316 = vld [vmem:[#allocation7] sm:$0xff]
    %v317 = vld [vmem:[#allocation7 + $0x8] sm:$0xff]
    %v318 = vld [vmem:[#allocation7 + $0x10] sm:$0xff]
    %v319 = vld [vmem:[#allocation7 + $0x18] sm:$0xff]
    %v320 = vld [vmem:[#allocation7 + $0x20] sm:$0xff]
    %v321 = vld [vmem:[#allocation7 + $0x28] sm:$0xff]
    %v322 = vld [vmem:[#allocation7 + $0x30] sm:$0xff]
    %v323 = vld [vmem:[#allocation7 + $0x38] sm:$0xff]
    %v324 = vld [vmem:[#allocation7 + $0x40] sm:$0xff]
    %v325 = vld [vmem:[#allocation7 + $0x48] sm:$0xff]
    %v326 = vld [vmem:[#allocation7 + $0x50] sm:$0xff]
    %v327 = vld [vmem:[#allocation7 + $0x58] sm:$0xff]
    %v328 = vld [vmem:[#allocation7 + $0x60] sm:$0xff]
    %v329 = vld [vmem:[#allocation7 + $0x68] sm:$0xff]
    %v330 = vld [vmem:[#allocation7 + $0x70] sm:$0xff]
    %v331 = vld [vmem:[#allocation7 + $0x78] sm:$0xff]
    %v332 = vld [vmem:[%s8] sm:$0x1]
    %v334 = vlaneseq
    %v335 = vshrl.u32 %v334, 7
    %v336 = vsub.s32 0, %v335
    %v337 = vrot.slane %v332, %v336
    %339 = vmatprep.subr.mxu0 0.0
    %340 = vmatpush1.msra.mxu0 %v316
    %341 = vmatprep.subr.mxu0 0.0
    %342 = vmatpush1.msra.mxu0 %v317
    %343 = vmatprep.subr.mxu0 0.0
    %344 = vmatpush1.msra.mxu0 %v318
    %345 = vmatprep.subr.mxu0 0.0
    %346 = vmatpush1.msra.mxu0 %v319
    %347 = vmatprep.subr.mxu0 0.0
    %348 = vmatpush1.msra.mxu0 %v320
    %349 = vmatprep.subr.mxu0 0.0
    %350 = vmatpush1.msra.mxu0 %v321
    %351 = vmatprep.subr.mxu0 0.0
    %352 = vmatpush1.msra.mxu0 %v322
    %353 = vmatprep.subr.mxu0 0.0
    %354 = vmatpush1.msra.mxu0 %v323
    %355 = vmatprep.subr.mxu0 0.0
    %356 = vmatpush1.msra.mxu0 %v324
    %357 = vmatprep.subr.mxu0 0.0
    %358 = vmatpush1.msra.mxu0 %v325
    %359 = vmatprep.subr.mxu0 0.0
    %360 = vmatpush1.msra.mxu0 %v326
    %361 = vmatprep.subr.mxu0 0.0
    %362 = vmatpush1.msra.mxu0 %v327
    %363 = vmatprep.subr.mxu0 0.0
    %364 = vmatpush1.msra.mxu0 %v328
    %365 = vmatprep.subr.mxu0 0.0
    %366 = vmatpush1.msra.mxu0 %v329
    %367 = vmatprep.subr.mxu0 0.0
    %368 = vmatpush1.msra.mxu0 %v330
    %369 = vmatprep.subr.mxu0 0.0
    %370 = vmatpush1.msra.mxu0 %v331
    %371 = vmatprep.subr.mxu0 0.0
    %372 = vmatpush1.msra.mxu0 0.0
    %373 = vmatprep.subr.mxu0 0.0
    %374 = vmatpush1.msra.mxu0 0.0
    %375 = vmatprep.subr.mxu0 0.0
    %376 = vmatpush1.msra.mxu0 0.0
    %377 = vmatprep.subr.mxu0 0.0
    %378 = vmatpush1.msra.mxu0 0.0
    %379 = vmatprep.subr.mxu0 0.0
    %380 = vmatpush1.msra.mxu0 0.0
    %381 = vmatprep.subr.mxu0 0.0
    %382 = vmatpush1.msra.mxu0 0.0
    %383 = vmatprep.subr.mxu0 0.0
    %384 = vmatpush1.msra.mxu0 0.0
    %385 = vmatprep.subr.mxu0 0.0
    %386 = vmatpush1.msra.mxu0 0.0
    %387 = vmatprep.subr.mxu0 0.0
    %388 = vmatpush1.msra.mxu0 0.0
    %389 = vmatprep.subr.mxu0 0.0
    %390 = vmatpush1.msra.mxu0 0.0
    %391 = vmatprep.subr.mxu0 0.0
    %392 = vmatpush1.msra.mxu0 0.0
    %393 = vmatprep.subr.mxu0 0.0
    %394 = vmatpush1.msra.mxu0 0.0
    %395 = vmatprep.subr.mxu0 0.0
    %396 = vmatpush1.msra.mxu0 0.0
    %397 = vmatprep.subr.mxu0 0.0
    %398 = vmatpush1.msra.mxu0 0.0
    %399 = vmatprep.subr.mxu0 0.0
    %400 = vmatpush1.msra.mxu0 0.0
    %401 = vmatprep.subr.mxu0 0.0
    %402 = vmatpush1.msra.mxu0 0.0
    %403 = vmatprep.mubr.f32.mxu0 0.0
    %404 = vmatmul.mubr.f32.gmra.mrb[0].mxu0 %v315
    %v405 = vpop.f32.mrb[0].mxu0
    %v406 = vadd.f32 %v337, %v405
    %v407 = vpop.f32.mrb[0].mxu0
    %408 = vdwg.mxu0
    %409 = vst [vmem:[#allocation8] sm:$0xff] %v406
    // Predicated region
    $region50: #{qnetwork_forward_padded.1} parent=1 // pred_check
      _
    $region51: #{qnetwork_forward_padded.1} parent=1 // pred_check_branch
      %411 = sbr.rel (0) target = $region53
    $region52: #{qnetwork_forward_padded.1} parent=1 // pred_region
      %s413 = ssub.s32 128, 128
      %414 = vsyncadd [#allocation4], %s413
      %s416 = sshll.u32 [#allocation8], 4
      %s417 = int_to_ptr.vmem [resolvable:$true] %s416
      %419 = dma.vmem_to_hbm [thread:$0]  %s417, 128, %s9, [#allocation4]
    $region53: #{qnetwork_forward_padded.1} parent=1 // pred_fallthru
      _
    // Predicated region
    $region54: #{qnetwork_forward_padded.1} parent=1 // pred_check
      _
    $region55: #{qnetwork_forward_padded.1} parent=1 // pred_check_branch
      %421 = sbr.rel (0) target = $region57
    $region56: #{qnetwork_forward_padded.1} parent=1 // pred_region
      %422 = dma.done [#allocation4], 128
    $region57: #{qnetwork_forward_padded.1} parent=1 // pred_fallthru
      _
    %423 = vsyncpa [#allocation3], 1
    %424 = vsyncpa [#allocation6], 1
    %425 = vsyncpa [#allocation4], 1

</llo_original>
